<compile_context>
chip_gen: v6e
topology: v6e:2x2x1
jax: 0.10.0
libtpu: 0.0.40
codegen_flags: <defaults>
</compile_context>

<pallas_src>
import jax
import jax.numpy as jnp
from jax.experimental import pallas as pl
from jax.experimental.pallas import tpu as pltpu


def _round_up(n, m):
    return ((n + m - 1) // m) * m


def _leaky_relu(x, slope=0.01):
    return jnp.where(x >= 0, x, slope * x)


def ffn_kernel(x_ref,
               w1_ref, b1_ref,
               w2_ref, b2_ref,
               w3_ref, b3_ref,
               w4_ref, b4_ref,
               o_ref):
    # bf16 matmul operands (single MXU pass), f32 accumulation + f32 epilogue.
    h = x_ref[...].astype(jnp.bfloat16)

    h = jnp.dot(h, w1_ref[...], preferred_element_type=jnp.float32) + b1_ref[...]
    h = _leaky_relu(h)

    h = jnp.dot(h.astype(jnp.bfloat16), w2_ref[...],
                preferred_element_type=jnp.float32) + b2_ref[...]
    h = _leaky_relu(h)

    h = jnp.dot(h.astype(jnp.bfloat16), w3_ref[...],
                preferred_element_type=jnp.float32) + b3_ref[...]
    h = _leaky_relu(h)

    h = jnp.dot(h.astype(jnp.bfloat16), w4_ref[...],
                preferred_element_type=jnp.float32) + b4_ref[...]

    # Sigmoid = 1 / (1 + exp(-x)): exp and approx-reciprocal both run on the EUP slot,
    # keeping the VALU free (instead of jax.nn.sigmoid's exact divide).
    h = pl.reciprocal(1.0 + jnp.exp(-h), approx=True)

    o_ref[...] = h.astype(o_ref.dtype)


def _num_tensorcores_per_chip():
    """v7x packs 2 TensorCores per chip; v5e/v6e have 1."""
    try:
        kind = (getattr(jax.devices()[0], "device_kind", "") or "").lower()
        if "v7" in kind:
            return 2
    except Exception:
        pass
    return 1


# Rows per grid step cap: ~6 MiB of live VMEM at D_i=32/D_k=64/D_o=16, safely inside
# even v5e's 16 MiB scoped default once vmem_limit_bytes is raised below.
_MAX_TILE_B = 4096


def _choose_tile_b(B, num_tc):
    """Big steps to amortize the ~0.35us/step cost; split across TCs only on dual-TC
    chips (v7x) and only when each TC still gets large steps."""
    B8 = _round_up(max(B, 8), 8)
    lanes = num_tc if (num_tc >= 2 and B8 >= 2048) else 1
    per_lane = pl.cdiv(B8, lanes)
    steps_per_lane = max(1, pl.cdiv(per_lane, _MAX_TILE_B))
    n_steps = steps_per_lane * lanes
    return _round_up(pl.cdiv(B8, n_steps), 8)


def simple_model_forward(x, params, *, tile_b=None, out_dtype=jnp.float32):
    """x: (B, D_i) f32 or bf16. params: w1..w4 stored (in, out) in bf16, b1..b4 (1, out) f32."""
    B, D_i = x.shape
    D_k = params["w1"].shape[1]
    D_o = params["w4"].shape[1]

    num_tc = _num_tensorcores_per_chip()
    if tile_b is None:
        tile_b = _choose_tile_b(B, num_tc)
    assert tile_b % 8 == 0

    # Pad batch so the grid divides evenly (padded rows are sliced off at the end).
    B_pad = _round_up(B, tile_b)
    if B_pad != B:
        x = jnp.pad(x, ((0, B_pad - B), (0, 0)))

    grid = (B_pad // tile_b,)

    def rep_spec(shape):
        # Full weight/bias resident in VMEM for every grid step (tiny at these dims).
        return pl.BlockSpec(shape, lambda i: (0,) * len(shape))

    x_bpe = jnp.dtype(x.dtype).itemsize
    o_bpe = jnp.dtype(out_dtype).itemsize
    w_bytes = (D_i * D_k + 2 * D_k * D_k + D_k * D_o) * 2 + (3 * D_k + D_o) * 4

    flops = 2 * B_pad * (D_i * D_k + 2 * D_k * D_k + D_k * D_o)
    bytes_accessed = B_pad * D_i * x_bpe + w_bytes + B_pad * D_o * o_bpe
    cost = pl.CostEstimate(flops=flops,
                           transcendentals=2 * B_pad * D_o,   # exp + approx rcp
                           bytes_accessed=bytes_accessed)

    # Scoped-VMEM budget: double-buffered x/out tiles + ~4 live f32 intermediates + weights.
    vmem_need = (2 * tile_b * D_i * x_bpe
                 + 2 * tile_b * D_o * o_bpe
                 + 4 * tile_b * D_k * 4
                 + 2 * w_bytes)
    # Raise above the v5e (16 MiB) default, stay comfortably under v7x's 64 MiB physical.
    vmem_limit = int(min(48 << 20, max(32 << 20, 2 * vmem_need)))

    out = pl.pallas_call(
        ffn_kernel,
        out_shape=jax.ShapeDtypeStruct((B_pad, D_o), out_dtype),
        grid_spec=pltpu.PrefetchScalarGridSpec(
            num_scalar_prefetch=0,
            grid=grid,
            in_specs=[
                pl.BlockSpec((tile_b, D_i), lambda i: (i, 0)),
                rep_spec((D_i, D_k)), rep_spec((1, D_k)),
                rep_spec((D_k, D_k)), rep_spec((1, D_k)),
                rep_spec((D_k, D_k)), rep_spec((1, D_k)),
                rep_spec((D_k, D_o)), rep_spec((1, D_o)),
            ],
            out_specs=pl.BlockSpec((tile_b, D_o), lambda i: (i, 0)),
        ),
        compiler_params=pltpu.CompilerParams(
            dimension_semantics=("parallel",),
            vmem_limit_bytes=vmem_limit),
        cost_estimate=cost,
    )(x,
      params["w1"], params["b1"],
      params["w2"], params["b2"],
      params["w3"], params["b3"],
      params["w4"], params["b4"])

    return out[:B] if B_pad != B else out


def init_params(key, D_i, D_k, D_o):
    """Kaiming-normal weights (std = sqrt(2 / fan_in)), zero biases.

    Weights stored as (in, out) in bf16 (MXU single-pass); biases (1, out) in f32.
    """
    ks = jax.random.split(key, 4)
    dims = [(D_i, D_k), (D_k, D_k), (D_k, D_k), (D_k, D_o)]
    params = {}
    for idx, (k, (fan_in, fan_out)) in enumerate(zip(ks, dims), start=1):
        std = (2.0 / fan_in) ** 0.5
        w = std * jax.random.normal(k, (fan_in, fan_out), dtype=jnp.float32)
        params[f"w{idx}"] = w.astype(jnp.bfloat16)
        params[f"b{idx}"] = jnp.zeros((1, fan_out), dtype=jnp.float32)
    return params


def reference_forward(x, params):
    # Pure-JAX reference emulating the kernel's numerics (bf16 operands, f32 accum).
    # Uses exact sigmoid; the kernel's approx reciprocal differs by O(1e-3) at most.
    h = x
    for i in range(1, 4):
        h = jnp.dot(h.astype(jnp.bfloat16), params[f"w{i}"],
                    preferred_element_type=jnp.float32) + params[f"b{i}"]
        h = jnp.where(h >= 0, h, 0.01 * h)
    h = jnp.dot(h.astype(jnp.bfloat16), params["w4"],
                preferred_element_type=jnp.float32) + params["b4"]
    return jax.nn.sigmoid(h)


if __name__ == "__main__":
    D_i, D_k, D_o = 32, 64, 16
    B = 24  # exercises batch padding / grid selection and the unpadded D_o output path

    key = jax.random.PRNGKey(0)
    k_x, k_p = jax.random.split(key)
    x = jax.random.normal(k_x, (B, D_i), dtype=jnp.float32)
    params = init_params(k_p, D_i, D_k, D_o)

    out = simple_model_forward(x, params)
    out = jax.block_until_ready(out)

    ref = reference_forward(x, params)
    assert out.shape == (B, D_o)
    assert jnp.allclose(out, ref, atol=1e-2, rtol=1e-2), float(jnp.max(jnp.abs(out - ref)))

    print("KERNEL_OK")
</pallas_src>

<mosaic_0001>
module attributes {stable_mosaic.version = 11 : i64} {
  func.func @ffn_kernel(%arg0: i32, %arg1: memref<24x32xf32, #tpu.memory_space<vmem>>, %arg2: memref<32x64xbf16, #tpu.memory_space<vmem>>, %arg3: memref<1x64xf32, #tpu.memory_space<vmem>>, %arg4: memref<64x64xbf16, #tpu.memory_space<vmem>>, %arg5: memref<1x64xf32, #tpu.memory_space<vmem>>, %arg6: memref<64x64xbf16, #tpu.memory_space<vmem>>, %arg7: memref<1x64xf32, #tpu.memory_space<vmem>>, %arg8: memref<64x16xbf16, #tpu.memory_space<vmem>>, %arg9: memref<1x16xf32, #tpu.memory_space<vmem>>, %arg10: memref<24x16xf32, #tpu.memory_space<vmem>>) attributes {dimension_semantics = [#tpu.dimension_semantics<parallel>], iteration_bounds = array<i64: 1>, scalar_prefetch = 0 : i64, scratch_operands = 0 : i64, tpu.core_type = #tpu.core_type<tc>, window_params = [{transform_indices = @transform_0, window_bounds = array<i64: 24, 32>}, {pipeline_mode = #tpu.pipeline_mode<synchronous>, transform_indices = @transform_1, window_bounds = array<i64: 32, 64>}, {pipeline_mode = #tpu.pipeline_mode<synchronous>, transform_indices = @transform_2, window_bounds = array<i64: 1, 64>}, {pipeline_mode = #tpu.pipeline_mode<synchronous>, transform_indices = @transform_3, window_bounds = array<i64: 64, 64>}, {pipeline_mode = #tpu.pipeline_mode<synchronous>, transform_indices = @transform_4, window_bounds = array<i64: 1, 64>}, {pipeline_mode = #tpu.pipeline_mode<synchronous>, transform_indices = @transform_5, window_bounds = array<i64: 64, 64>}, {pipeline_mode = #tpu.pipeline_mode<synchronous>, transform_indices = @transform_6, window_bounds = array<i64: 1, 64>}, {pipeline_mode = #tpu.pipeline_mode<synchronous>, transform_indices = @transform_7, window_bounds = array<i64: 64, 16>}, {pipeline_mode = #tpu.pipeline_mode<synchronous>, transform_indices = @transform_8, window_bounds = array<i64: 1, 16>}, {transform_indices = @transform_9, window_bounds = array<i64: 24, 16>}]} {
    %c0 = arith.constant 0 : index
    %c0_0 = arith.constant 0 : index
    %0 = vector.load %arg1[%c0, %c0_0] : memref<24x32xf32, #tpu.memory_space<vmem>>, vector<24x32xf32>
    %1 = arith.truncf %0 : vector<24x32xf32> to vector<24x32xbf16>
    %c0_1 = arith.constant 0 : index
    %c0_2 = arith.constant 0 : index
    %2 = vector.load %arg2[%c0_1, %c0_2] : memref<32x64xbf16, #tpu.memory_space<vmem>>, vector<32x64xbf16>
    %cst = arith.constant dense<0.000000e+00> : vector<24x64xf32>
    %3 = tpu.matmul %1, %2, %cst {dimension_numbers = #tpu.dot_dimension_numbers<[1], [0], [0], [1], [0, 0, 1, 1], [], []>} : vector<24x32xbf16>, vector<32x64xbf16>, vector<24x64xf32> -> vector<24x64xf32>
    %c0_3 = arith.constant 0 : index
    %c0_4 = arith.constant 0 : index
    %4 = vector.load %arg3[%c0_3, %c0_4] : memref<1x64xf32, #tpu.memory_space<vmem>>, vector<1x64xf32>
    %5 = vector.broadcast %4 : vector<1x64xf32> to vector<24x64xf32>
    %6 = arith.addf %3, %5 : vector<24x64xf32>
    %cst_5 = arith.constant 0.000000e+00 : f32
    %7 = vector.broadcast %cst_5 : f32 to vector<24x64xf32>
    %8 = arith.cmpf oge, %6, %7 : vector<24x64xf32>
    %cst_6 = arith.constant 0.00999999977 : f32
    %9 = vector.broadcast %cst_6 : f32 to vector<24x64xf32>
    %10 = arith.mulf %9, %6 : vector<24x64xf32>
    %11 = arith.select %8, %6, %10 : vector<24x64xi1>, vector<24x64xf32>
    %12 = arith.truncf %11 : vector<24x64xf32> to vector<24x64xbf16>
    %c0_7 = arith.constant 0 : index
    %c0_8 = arith.constant 0 : index
    %13 = vector.load %arg4[%c0_7, %c0_8] : memref<64x64xbf16, #tpu.memory_space<vmem>>, vector<64x64xbf16>
    %cst_9 = arith.constant dense<0.000000e+00> : vector<24x64xf32>
    %14 = tpu.matmul %12, %13, %cst_9 {dimension_numbers = #tpu.dot_dimension_numbers<[1], [0], [0], [1], [0, 0, 1, 1], [], []>} : vector<24x64xbf16>, vector<64x64xbf16>, vector<24x64xf32> -> vector<24x64xf32>
    %c0_10 = arith.constant 0 : index
    %c0_11 = arith.constant 0 : index
    %15 = vector.load %arg5[%c0_10, %c0_11] : memref<1x64xf32, #tpu.memory_space<vmem>>, vector<1x64xf32>
    %16 = vector.broadcast %15 : vector<1x64xf32> to vector<24x64xf32>
    %17 = arith.addf %14, %16 : vector<24x64xf32>
    %cst_12 = arith.constant 0.000000e+00 : f32
    %18 = vector.broadcast %cst_12 : f32 to vector<24x64xf32>
    %19 = arith.cmpf oge, %17, %18 : vector<24x64xf32>
    %cst_13 = arith.constant 0.00999999977 : f32
    %20 = vector.broadcast %cst_13 : f32 to vector<24x64xf32>
    %21 = arith.mulf %20, %17 : vector<24x64xf32>
    %22 = arith.select %19, %17, %21 : vector<24x64xi1>, vector<24x64xf32>
    %23 = arith.truncf %22 : vector<24x64xf32> to vector<24x64xbf16>
    %c0_14 = arith.constant 0 : index
    %c0_15 = arith.constant 0 : index
    %24 = vector.load %arg6[%c0_14, %c0_15] : memref<64x64xbf16, #tpu.memory_space<vmem>>, vector<64x64xbf16>
    %cst_16 = arith.constant dense<0.000000e+00> : vector<24x64xf32>
    %25 = tpu.matmul %23, %24, %cst_16 {dimension_numbers = #tpu.dot_dimension_numbers<[1], [0], [0], [1], [0, 0, 1, 1], [], []>} : vector<24x64xbf16>, vector<64x64xbf16>, vector<24x64xf32> -> vector<24x64xf32>
    %c0_17 = arith.constant 0 : index
    %c0_18 = arith.constant 0 : index
    %26 = vector.load %arg7[%c0_17, %c0_18] : memref<1x64xf32, #tpu.memory_space<vmem>>, vector<1x64xf32>
    %27 = vector.broadcast %26 : vector<1x64xf32> to vector<24x64xf32>
    %28 = arith.addf %25, %27 : vector<24x64xf32>
    %cst_19 = arith.constant 0.000000e+00 : f32
    %29 = vector.broadcast %cst_19 : f32 to vector<24x64xf32>
    %30 = arith.cmpf oge, %28, %29 : vector<24x64xf32>
    %cst_20 = arith.constant 0.00999999977 : f32
    %31 = vector.broadcast %cst_20 : f32 to vector<24x64xf32>
    %32 = arith.mulf %31, %28 : vector<24x64xf32>
    %33 = arith.select %30, %28, %32 : vector<24x64xi1>, vector<24x64xf32>
    %34 = arith.truncf %33 : vector<24x64xf32> to vector<24x64xbf16>
    %c0_21 = arith.constant 0 : index
    %c0_22 = arith.constant 0 : index
    %35 = vector.load %arg8[%c0_21, %c0_22] : memref<64x16xbf16, #tpu.memory_space<vmem>>, vector<64x16xbf16>
    %cst_23 = arith.constant dense<0.000000e+00> : vector<24x16xf32>
    %36 = tpu.matmul %34, %35, %cst_23 {dimension_numbers = #tpu.dot_dimension_numbers<[1], [0], [0], [1], [0, 0, 1, 1], [], []>} : vector<24x64xbf16>, vector<64x16xbf16>, vector<24x16xf32> -> vector<24x16xf32>
    %c0_24 = arith.constant 0 : index
    %c0_25 = arith.constant 0 : index
    %37 = vector.load %arg9[%c0_24, %c0_25] : memref<1x16xf32, #tpu.memory_space<vmem>>, vector<1x16xf32>
    %38 = vector.broadcast %37 : vector<1x16xf32> to vector<24x16xf32>
    %39 = arith.addf %36, %38 : vector<24x16xf32>
    %cst_26 = arith.constant 0.000000e+00 : f32
    %40 = vector.broadcast %cst_26 : f32 to vector<24x16xf32>
    %41 = arith.subf %40, %39 : vector<24x16xf32>
    %42 = math.exp %41 : vector<24x16xf32>
    %cst_27 = arith.constant 1.000000e+00 : f32
    %43 = vector.broadcast %cst_27 : f32 to vector<24x16xf32>
    %44 = arith.addf %43, %42 : vector<24x16xf32>
    %45 = tpu.reciprocal %44 {approx = true} : vector<24x16xf32> -> vector<24x16xf32>
    %c0_28 = arith.constant 0 : index
    %c0_29 = arith.constant 0 : index
    %46 = vector.load %arg10[%c0_28, %c0_29] : memref<24x16xf32, #tpu.memory_space<vmem>>, vector<24x16xf32>
    tpu.vector_store %arg10[%c0_28, %c0_29], %45 {strides = array<i32>} : memref<24x16xf32, #tpu.memory_space<vmem>>, vector<24x16xf32>,
    return
  }
  func.func @transform_0(%arg0: i32) -> (i32, i32) {
    %c0_i32 = arith.constant 0 : i32
    %c0_i32_0 = arith.constant 0 : i32
    return %arg0, %c0_i32 : i32, i32
  }
  func.func @transform_1(%arg0: i32) -> (i32, i32) {
    %c0_i32 = arith.constant 0 : i32
    %c0_i32_0 = arith.constant 0 : i32
    %c0_i32_1 = arith.constant 0 : i32
    return %c0_i32, %c0_i32_0 : i32, i32
  }
  func.func @transform_2(%arg0: i32) -> (i32, i32) {
    %c0_i32 = arith.constant 0 : i32
    %c0_i32_0 = arith.constant 0 : i32
    %c0_i32_1 = arith.constant 0 : i32
    return %c0_i32, %c0_i32_0 : i32, i32
  }
  func.func @transform_3(%arg0: i32) -> (i32, i32) {
    %c0_i32 = arith.constant 0 : i32
    %c0_i32_0 = arith.constant 0 : i32
    %c0_i32_1 = arith.constant 0 : i32
    return %c0_i32, %c0_i32_0 : i32, i32
  }
  func.func @transform_4(%arg0: i32) -> (i32, i32) {
    %c0_i32 = arith.constant 0 : i32
    %c0_i32_0 = arith.constant 0 : i32
    %c0_i32_1 = arith.constant 0 : i32
    return %c0_i32, %c0_i32_0 : i32, i32
  }
  func.func @transform_5(%arg0: i32) -> (i32, i32) {
    %c0_i32 = arith.constant 0 : i32
    %c0_i32_0 = arith.constant 0 : i32
    %c0_i32_1 = arith.constant 0 : i32
    return %c0_i32, %c0_i32_0 : i32, i32
  }
  func.func @transform_6(%arg0: i32) -> (i32, i32) {
    %c0_i32 = arith.constant 0 : i32
    %c0_i32_0 = arith.constant 0 : i32
    %c0_i32_1 = arith.constant 0 : i32
    return %c0_i32, %c0_i32_0 : i32, i32
  }
  func.func @transform_7(%arg0: i32) -> (i32, i32) {
    %c0_i32 = arith.constant 0 : i32
    %c0_i32_0 = arith.constant 0 : i32
    %c0_i32_1 = arith.constant 0 : i32
    return %c0_i32, %c0_i32_0 : i32, i32
  }
  func.func @transform_8(%arg0: i32) -> (i32, i32) {
    %c0_i32 = arith.constant 0 : i32
    %c0_i32_0 = arith.constant 0 : i32
    %c0_i32_1 = arith.constant 0 : i32
    return %c0_i32, %c0_i32_0 : i32, i32
  }
  func.func @transform_9(%arg0: i32) -> (i32, i32) {
    %c0_i32 = arith.constant 0 : i32
    %c0_i32_0 = arith.constant 0 : i32
    return %arg0, %c0_i32 : i32, i32
  }
}

</mosaic_0001>

<llo_original>
// kernel: tpu_custom_call.1
$region0: #{tpu_custom_call.1}
  #allocation0 [shape = 'u32[]', space=smem, size = 0x4, offset = 0x4, fixed_abs, tag = 'smem constant byte address 0x4 - core index']
  #allocation1 [shape = 'u32[144,128]{1,0:T(1,128)}', space=vmem, size = 0x12000, scoped, tag = 'internal scratch']
  %s0 = inlined_call_operand.hbm [shape: f32[24,32], index: 0, kind: input, shape index: {}]
  %s1 = inlined_call_operand.hbm [shape: bf16[32,64], index: 1, kind: input, shape index: {}]
  %s2 = inlined_call_operand.vmem [shape: f32[1,64], index: 2, kind: input, shape index: {}]
  %s3 = inlined_call_operand.vmem [shape: bf16[64,64], index: 3, kind: input, shape index: {}]
  %s4 = inlined_call_operand.vmem [shape: f32[1,64], index: 4, kind: input, shape index: {}]
  %s5 = inlined_call_operand.hbm [shape: bf16[64,64], index: 5, kind: input, shape index: {}]
  %s6 = inlined_call_operand.vmem [shape: f32[1,64], index: 6, kind: input, shape index: {}]
  %s7 = inlined_call_operand.vmem [shape: bf16[64,16], index: 7, kind: input, shape index: {}]
  %s8 = inlined_call_operand.vmem [shape: f32[1,16], index: 8, kind: input, shape index: {}]
  %s9 = inlined_call_operand.vmem [shape: f32[24,16], index: 9, kind: output, shape index: {}]
  %s10 = sld [smem:[#allocation0]]
  $region58: #{tpu_custom_call.1} parent=0
    _
  %s12 = ssub.s32 1, %s10
  %s13 = scalar_select 0, %s12, %s10
  $region1: #{tpu_custom_call.1} parent=0
    #allocation2 [shape = 'u8[12288]{0}', space=vmem, size = 0x3000, scoped, tag = 'input window, operand 0, single buffered']
    #allocation3 [shape = 's32[1]{0}', space=sflag, size = 0x4, scoped, tag = 'scoped memory for tpu_custom_call.1']
    #allocation4 [shape = 'u8[8192]{0}', space=vmem, size = 0x2000, scoped, tag = 'input window, operand 1, single buffered']
    #allocation5 [shape = 's32[1]{0}', space=sflag, size = 0x4, scoped, tag = 'scoped memory for tpu_custom_call.1']
    #allocation6 [shape = 'u8[16384]{0}', space=vmem, size = 0x4000, scoped, tag = 'input window, operand 5, single buffered']
    %14 = vsyncpa [#allocation3], 0
    %15 = vsyncpa [#allocation5], 0
    // Predicated region
    $region2: #{tpu_custom_call.1} parent=1 // pred_check
      _
    $region3: #{tpu_custom_call.1} parent=1 // pred_check_branch
      %17 = sbr.rel (0) target = $region5
    $region4: #{tpu_custom_call.1} parent=1 // pred_region
      %s19 = ssub.s32 384, 384
      %20 = vsyncadd [#allocation3], %s19
      %s21 = sshll.u32 [#allocation2], 4
      %s22 = int_to_ptr.vmem [resolvable:$true] %s21
      %27 = dma.hbm_to_vmem [thread:$0]  %s0, 384, %s22, [#allocation3], 128, 128, 8
    $region5: #{tpu_custom_call.1} parent=1 // pred_fallthru
      _
    // Predicated region
    $region6: #{tpu_custom_call.1} parent=1 // pred_check
      _
    $region7: #{tpu_custom_call.1} parent=1 // pred_check_branch
      %29 = sbr.rel (0) target = $region9
    $region8: #{tpu_custom_call.1} parent=1 // pred_region
      %s31 = ssub.s32 256, 256
      %32 = vsyncadd [#allocation5], %s31
      %s33 = sshll.u32 [#allocation4], 4
      %s34 = int_to_ptr.vmem [resolvable:$true] %s33
      %39 = dma.hbm_to_vmem [thread:$0]  %s1, 256, %s34, [#allocation5], 64, 64, 4
    $region9: #{tpu_custom_call.1} parent=1 // pred_fallthru
      _
    // Predicated region
    $region10: #{tpu_custom_call.1} parent=1 // pred_check
      _
    $region11: #{tpu_custom_call.1} parent=1 // pred_check_branch
      %41 = sbr.rel (0) target = $region13
    $region12: #{tpu_custom_call.1} parent=1 // pred_region
      _
    $region13: #{tpu_custom_call.1} parent=1 // pred_fallthru
      _
    // Predicated region
    $region14: #{tpu_custom_call.1} parent=1 // pred_check
      _
    $region15: #{tpu_custom_call.1} parent=1 // pred_check_branch
      %43 = sbr.rel (0) target = $region17
    $region16: #{tpu_custom_call.1} parent=1 // pred_region
      _
    $region17: #{tpu_custom_call.1} parent=1 // pred_fallthru
      _
    // Predicated region
    $region18: #{tpu_custom_call.1} parent=1 // pred_check
      _
    $region19: #{tpu_custom_call.1} parent=1 // pred_check_branch
      %45 = sbr.rel (0) target = $region21
    $region20: #{tpu_custom_call.1} parent=1 // pred_region
      _
    $region21: #{tpu_custom_call.1} parent=1 // pred_fallthru
      _
    // Predicated region
    $region22: #{tpu_custom_call.1} parent=1 // pred_check
      _
    $region23: #{tpu_custom_call.1} parent=1 // pred_check_branch
      %47 = sbr.rel (0) target = $region25
    $region24: #{tpu_custom_call.1} parent=1 // pred_region
      %s49 = ssub.s32 512, 512
      %50 = vsyncadd [#allocation5], %s49
      %s51 = sshll.u32 [#allocation6], 4
      %s52 = int_to_ptr.vmem [resolvable:$true] %s51
      %57 = dma.hbm_to_vmem [thread:$0]  %s5, 512, %s52, [#allocation5], 64, 64, 4
    $region25: #{tpu_custom_call.1} parent=1 // pred_fallthru
      _
    // Predicated region
    $region26: #{tpu_custom_call.1} parent=1 // pred_check
      _
    $region27: #{tpu_custom_call.1} parent=1 // pred_check_branch
      %59 = sbr.rel (0) target = $region29
    $region28: #{tpu_custom_call.1} parent=1 // pred_region
      _
    $region29: #{tpu_custom_call.1} parent=1 // pred_fallthru
      _
    // Predicated region
    $region30: #{tpu_custom_call.1} parent=1 // pred_check
      _
    $region31: #{tpu_custom_call.1} parent=1 // pred_check_branch
      %61 = sbr.rel (0) target = $region33
    $region32: #{tpu_custom_call.1} parent=1 // pred_region
      _
    $region33: #{tpu_custom_call.1} parent=1 // pred_fallthru
      _
    // Predicated region
    $region34: #{tpu_custom_call.1} parent=1 // pred_check
      _
    $region35: #{tpu_custom_call.1} parent=1 // pred_check_branch
      %63 = sbr.rel (0) target = $region37
    $region36: #{tpu_custom_call.1} parent=1 // pred_region
      _
    $region37: #{tpu_custom_call.1} parent=1 // pred_fallthru
      _
    // Predicated region
    $region38: #{tpu_custom_call.1} parent=1 // pred_check
      _
    $region39: #{tpu_custom_call.1} parent=1 // pred_check_branch
      %65 = sbr.rel (0) target = $region41
    $region40: #{tpu_custom_call.1} parent=1 // pred_region
      %66 = dma.done [#allocation3], 384
    $region41: #{tpu_custom_call.1} parent=1 // pred_fallthru
      _
    // Predicated region
    $region42: #{tpu_custom_call.1} parent=1 // pred_check
      _
    $region43: #{tpu_custom_call.1} parent=1 // pred_check_branch
      %68 = sbr.rel (0) target = $region45
    $region44: #{tpu_custom_call.1} parent=1 // pred_region
      %69 = dma.done [#allocation5], 256
    $region45: #{tpu_custom_call.1} parent=1 // pred_fallthru
      _
    // Predicated region
    $region46: #{tpu_custom_call.1} parent=1 // pred_check
      _
    $region47: #{tpu_custom_call.1} parent=1 // pred_check_branch
      %71 = sbr.rel (0) target = $region49
    $region48: #{tpu_custom_call.1} parent=1 // pred_region
      %72 = dma.done [#allocation5], 512
    $region49: #{tpu_custom_call.1} parent=1 // pred_fallthru
      _
    %v74 = vld [vmem:[#allocation2] sm:$0xff]
    %v75 = vld [vmem:[#allocation2 + $0x8] sm:$0xff]
    %v76 = vld [vmem:[#allocation2 + $0x10] sm:$0xff]
    %v77 = vpack.c.bf16 %v75, %v74
    %v78 = vpack.c.bf16 %v76, %v76
    %v79 = vld [vmem:[#allocation4] sm:$0xf]
    %v80 = vld [vmem:[#allocation4 + $0x4] sm:$0xf]
    %v81 = vld [vmem:[#allocation4 + $0x8] sm:$0xf]
    %v82 = vld [vmem:[#allocation4 + $0xc] sm:$0xf]
    %v83 = vld [vmem:[%s2] sm:$0x1]
    %v85 = vlaneseq
    %v86 = vshrl.u32 %v85, 7
    %v87 = vsub.s32 0, %v86
    %v88 = vrot.slane %v83, %v87
    %v94 = vunpack.c.l.b16 %v79
    %v95 = vunpack.c.l.b16 %v80
    %v96 = vunpack.c.l.b16 %v81
    %v97 = vunpack.c.l.b16 %v82
    %v98 = vpack.c.b16 %v95, %v94
    %v99 = vpack.c.b16 %v97, %v96
    %vm102 = vcmask 261120
    %v104 = vsel %vm102, %v77, 0
    %v107 = vsel %vm102, %v78, 0
    %109 = vmatprep.subr.bf16.mxu0 0
    %110 = vmatpush1.bf16.msra.mxu0 0
    %111 = vmatprep.subr.bf16.mxu0 0
    %112 = vmatpush1.bf16.msra.mxu0 0
    %113 = vmatprep.subr.bf16.mxu0 0
    %114 = vmatpush1.bf16.msra.mxu0 0
    %115 = vmatprep.subr.bf16.mxu0 0
    %116 = vmatpush1.bf16.msra.mxu0 0
    %117 = vmatprep.subr.bf16.mxu0 0
    %118 = vmatpush1.bf16.msra.mxu0 0
    %119 = vmatprep.subr.bf16.mxu0 0
    %120 = vmatpush1.bf16.msra.mxu0 0
    %121 = vmatprep.subr.bf16.mxu0 0
    %122 = vmatpush1.bf16.msra.mxu0 %v99
    %123 = vmatprep.subr.bf16.mxu0 0
    %124 = vmatpush1.bf16.msra.mxu0 %v98
    %125 = vmatprep.subr.bf16.mxu0 0
    %126 = vmatpush2.bf16.msra.mxu0 0
    %127 = vmatprep.subr.bf16.mxu0 0
    %128 = vmatpush2.bf16.msra.mxu0 0
    %129 = vmatprep.subr.bf16.mxu0 0
    %130 = vmatpush2.bf16.msra.mxu0 0
    %131 = vmatprep.subr.bf16.mxu0 0
    %132 = vmatpush2.bf16.msra.mxu0 0
    %133 = vmatprep.subr.bf16.mxu0 0
    %134 = vmatpush2.bf16.msra.mxu0 0
    %135 = vmatprep.subr.bf16.mxu0 0
    %136 = vmatpush2.bf16.msra.mxu0 0
    %137 = vmatprep.subr.bf16.mxu0 0
    %138 = vmatpush2.bf16.msra.mxu0 0
    %139 = vmatprep.subr.bf16.mxu0 0
    %140 = vmatpush2.bf16.msra.mxu0 0
    %141 = vmatprep.mubr.bf16.mxu0 0
    %142 = vmatmul.mubr.bf16.gmra.mxu0 %v104
    %v143 = vpop.f32.mrf.mxu0
    %v144 = vadd.f32 %v88, %v143
    %v145 = vpop.f32.mrf.mxu0
    %v146 = vpop.f32.mrf.mxu0
    %v147 = vadd.f32 %v88, %v146
    %v148 = vpop.f32.mrf.mxu0
    %149 = vmatprep.mubr.bf16.mxu0 0
    %150 = vmatmul.mubr.bf16.gmra.mxu0 %v107
    %v151 = vpop.f32.mrf.mxu0
    %v152 = vadd.f32 %v88, %v151
    %v153 = vpop.f32.mrf.mxu0
    %v154 = vpop.f32.mrf.mxu0
    %v155 = vpop.f32.mrf.mxu0
    %156 = vdwg.mxu0
    %vm157 = vcmp.ge.f32.partialorder %v144, 0.0
    %vm158 = vcmp.ge.f32.partialorder %v147, 0.0
    %vm159 = vcmp.ge.f32.partialorder %v152, 0.0
    %v160 = vmul.f32 %v144, 0.01
    %v161 = vmul.f32 %v147, 0.01
    %v162 = vmul.f32 %v152, 0.01
    %v163 = vsel %vm157, %v144, %v160
    %v164 = vsel %vm158, %v147, %v161
    %v165 = vsel %vm159, %v152, %v162
    %v166 = vpack.c.bf16 %v164, %v163
    %v167 = vpack.c.bf16 %v165, %v165
    %v168 = vld [vmem:[%s3] sm:$0xf]
    %v169 = vld [vmem:[%s3 + $0x4] sm:$0xf]
    %v170 = vld [vmem:[%s3 + $0x8] sm:$0xf]
    %v171 = vld [vmem:[%s3 + $0xc] sm:$0xf]
    %v172 = vld [vmem:[%s3 + $0x10] sm:$0xf]
    %v173 = vld [vmem:[%s3 + $0x14] sm:$0xf]
    %v174 = vld [vmem:[%s3 + $0x18] sm:$0xf]
    %v175 = vld [vmem:[%s3 + $0x1c] sm:$0xf]
    %v176 = vld [vmem:[%s4] sm:$0x1]
    %v178 = vlaneseq
    %v179 = vshrl.u32 %v178, 7
    %v180 = vsub.s32 0, %v179
    %v181 = vrot.slane %v176, %v180
    %v191 = vunpack.c.l.b16 %v168
    %v192 = vunpack.c.l.b16 %v169
    %v193 = vunpack.c.l.b16 %v170
    %v194 = vunpack.c.l.b16 %v171
    %v195 = vunpack.c.l.b16 %v172
    %v196 = vunpack.c.l.b16 %v173
    %v197 = vunpack.c.l.b16 %v174
    %v198 = vunpack.c.l.b16 %v175
    %v199 = vpack.c.b16 %v192, %v191
    %v200 = vpack.c.b16 %v194, %v193
    %v201 = vpack.c.b16 %v196, %v195
    %v202 = vpack.c.b16 %v198, %v197
    %vm207 = vcmask 523264
    %v209 = vsel %vm207, %v166, 0
    %v212 = vsel %vm207, %v167, 0
    %214 = vmatprep.subr.bf16.mxu0 0
    %215 = vmatpush1.bf16.msra.mxu0 0
    %216 = vmatprep.subr.bf16.mxu0 0
    %217 = vmatpush1.bf16.msra.mxu0 0
    %218 = vmatprep.subr.bf16.mxu0 0
    %219 = vmatpush1.bf16.msra.mxu0 0
    %220 = vmatprep.subr.bf16.mxu0 0
    %221 = vmatpush1.bf16.msra.mxu0 0
    %222 = vmatprep.subr.bf16.mxu0 0
    %223 = vmatpush1.bf16.msra.mxu0 %v202
    %224 = vmatprep.subr.bf16.mxu0 0
    %225 = vmatpush1.bf16.msra.mxu0 %v201
    %226 = vmatprep.subr.bf16.mxu0 0
    %227 = vmatpush1.bf16.msra.mxu0 %v200
    %228 = vmatprep.subr.bf16.mxu0 0
    %229 = vmatpush1.bf16.msra.mxu0 %v199
    %230 = vmatprep.subr.bf16.mxu0 0
    %231 = vmatpush2.bf16.msra.mxu0 0
    %232 = vmatprep.subr.bf16.mxu0 0
    %233 = vmatpush2.bf16.msra.mxu0 0
    %234 = vmatprep.subr.bf16.mxu0 0
    %235 = vmatpush2.bf16.msra.mxu0 0
    %236 = vmatprep.subr.bf16.mxu0 0
    %237 = vmatpush2.bf16.msra.mxu0 0
    %238 = vmatprep.subr.bf16.mxu0 0
    %239 = vmatpush2.bf16.msra.mxu0 0
    %240 = vmatprep.subr.bf16.mxu0 0
    %241 = vmatpush2.bf16.msra.mxu0 0
    %242 = vmatprep.subr.bf16.mxu0 0
    %243 = vmatpush2.bf16.msra.mxu0 0
    %244 = vmatprep.subr.bf16.mxu0 0
    %245 = vmatpush2.bf16.msra.mxu0 0
    %246 = vmatprep.mubr.bf16.mxu0 0
    %247 = vmatmul.mubr.bf16.gmra.mxu0 %v209
    %v248 = vpop.f32.mrf.mxu0
    %v249 = vadd.f32 %v181, %v248
    %v250 = vpop.f32.mrf.mxu0
    %v251 = vpop.f32.mrf.mxu0
    %v252 = vadd.f32 %v181, %v251
    %v253 = vpop.f32.mrf.mxu0
    %254 = vmatprep.mubr.bf16.mxu0 0
    %255 = vmatmul.mubr.bf16.gmra.mxu0 %v212
    %v256 = vpop.f32.mrf.mxu0
    %v257 = vadd.f32 %v181, %v256
    %v258 = vpop.f32.mrf.mxu0
    %v259 = vpop.f32.mrf.mxu0
    %v260 = vpop.f32.mrf.mxu0
    %261 = vdwg.mxu0
    %vm262 = vcmp.ge.f32.partialorder %v249, 0.0
    %vm263 = vcmp.ge.f32.partialorder %v252, 0.0
    %vm264 = vcmp.ge.f32.partialorder %v257, 0.0
    %v265 = vmul.f32 %v249, 0.01
    %v266 = vmul.f32 %v252, 0.01
    %v267 = vmul.f32 %v257, 0.01
    %v268 = vsel %vm262, %v249, %v265
    %v269 = vsel %vm263, %v252, %v266
    %v270 = vsel %vm264, %v257, %v267
    %v271 = vpack.c.bf16 %v269, %v268
    %v272 = vpack.c.bf16 %v270, %v270
    %v273 = vld [vmem:[#allocation6] sm:$0xf]
    %v274 = vld [vmem:[#allocation6 + $0x4] sm:$0xf]
    %v275 = vld [vmem:[#allocation6 + $0x8] sm:$0xf]
    %v276 = vld [vmem:[#allocation6 + $0xc] sm:$0xf]
    %v277 = vld [vmem:[#allocation6 + $0x10] sm:$0xf]
    %v278 = vld [vmem:[#allocation6 + $0x14] sm:$0xf]
    %v279 = vld [vmem:[#allocation6 + $0x18] sm:$0xf]
    %v280 = vld [vmem:[#allocation6 + $0x1c] sm:$0xf]
    %v281 = vld [vmem:[%s6] sm:$0x1]
    %v283 = vlaneseq
    %v284 = vshrl.u32 %v283, 7
    %v285 = vsub.s32 0, %v284
    %v286 = vrot.slane %v281, %v285
    %v296 = vunpack.c.l.b16 %v273
    %v297 = vunpack.c.l.b16 %v274
    %v298 = vunpack.c.l.b16 %v275
    %v299 = vunpack.c.l.b16 %v276
    %v300 = vunpack.c.l.b16 %v277
    %v301 = vunpack.c.l.b16 %v278
    %v302 = vunpack.c.l.b16 %v279
    %v303 = vunpack.c.l.b16 %v280
    %v304 = vpack.c.b16 %v297, %v296
    %v305 = vpack.c.b16 %v299, %v298
    %v306 = vpack.c.b16 %v301, %v300
    %v307 = vpack.c.b16 %v303, %v302
    %v313 = vsel %vm207, %v271, 0
    %v316 = vsel %vm207, %v272, 0
    %318 = vmatprep.subr.bf16.mxu0 0
    %319 = vmatpush1.bf16.msra.mxu0 0
    %320 = vmatprep.subr.bf16.mxu0 0
    %321 = vmatpush1.bf16.msra.mxu0 0
    %322 = vmatprep.subr.bf16.mxu0 0
    %323 = vmatpush1.bf16.msra.mxu0 0
    %324 = vmatprep.subr.bf16.mxu0 0
    %325 = vmatpush1.bf16.msra.mxu0 0
    %326 = vmatprep.subr.bf16.mxu0 0
    %327 = vmatpush1.bf16.msra.mxu0 %v307
    %328 = vmatprep.subr.bf16.mxu0 0
    %329 = vmatpush1.bf16.msra.mxu0 %v306
    %330 = vmatprep.subr.bf16.mxu0 0
    %331 = vmatpush1.bf16.msra.mxu0 %v305
    %332 = vmatprep.subr.bf16.mxu0 0
    %333 = vmatpush1.bf16.msra.mxu0 %v304
    %334 = vmatprep.subr.bf16.mxu0 0
    %335 = vmatpush2.bf16.msra.mxu0 0
    %336 = vmatprep.subr.bf16.mxu0 0
    %337 = vmatpush2.bf16.msra.mxu0 0
    %338 = vmatprep.subr.bf16.mxu0 0
    %339 = vmatpush2.bf16.msra.mxu0 0
    %340 = vmatprep.subr.bf16.mxu0 0
    %341 = vmatpush2.bf16.msra.mxu0 0
    %342 = vmatprep.subr.bf16.mxu0 0
    %343 = vmatpush2.bf16.msra.mxu0 0
    %344 = vmatprep.subr.bf16.mxu0 0
    %345 = vmatpush2.bf16.msra.mxu0 0
    %346 = vmatprep.subr.bf16.mxu0 0
    %347 = vmatpush2.bf16.msra.mxu0 0
    %348 = vmatprep.subr.bf16.mxu0 0
    %349 = vmatpush2.bf16.msra.mxu0 0
    %350 = vmatprep.mubr.bf16.mxu0 0
    %351 = vmatmul.mubr.bf16.gmra.mxu0 %v313
    %v352 = vpop.f32.mrf.mxu0
    %v353 = vadd.f32 %v286, %v352
    %v354 = vpop.f32.mrf.mxu0
    %v355 = vpop.f32.mrf.mxu0
    %v356 = vadd.f32 %v286, %v355
    %v357 = vpop.f32.mrf.mxu0
    %358 = vmatprep.mubr.bf16.mxu0 0
    %359 = vmatmul.mubr.bf16.gmra.mxu0 %v316
    %v360 = vpop.f32.mrf.mxu0
    %v361 = vadd.f32 %v286, %v360
    %v362 = vpop.f32.mrf.mxu0
    %v363 = vpop.f32.mrf.mxu0
    %v364 = vpop.f32.mrf.mxu0
    %365 = vdwg.mxu0
    %vm366 = vcmp.ge.f32.partialorder %v353, 0.0
    %vm367 = vcmp.ge.f32.partialorder %v356, 0.0
    %vm368 = vcmp.ge.f32.partialorder %v361, 0.0
    %v369 = vmul.f32 %v353, 0.01
    %v370 = vmul.f32 %v356, 0.01
    %v371 = vmul.f32 %v361, 0.01
    %v372 = vsel %vm366, %v353, %v369
    %v373 = vsel %vm367, %v356, %v370
    %v374 = vsel %vm368, %v361, %v371
    %v375 = vpack.c.bf16 %v373, %v372
    %v376 = vpack.c.bf16 %v374, %v374
    %v377 = vld [vmem:[%s7] sm:$0xf]
    %v378 = vld [vmem:[%s7 + $0x4] sm:$0xf]
    %v379 = vld [vmem:[%s7 + $0x8] sm:$0xf]
    %v380 = vld [vmem:[%s7 + $0xc] sm:$0xf]
    %v381 = vld [vmem:[%s7 + $0x10] sm:$0xf]
    %v382 = vld [vmem:[%s7 + $0x14] sm:$0xf]
    %v383 = vld [vmem:[%s7 + $0x18] sm:$0xf]
    %v384 = vld [vmem:[%s7 + $0x1c] sm:$0xf]
    %v385 = vld [vmem:[%s8] sm:$0x1]
    %v387 = vlaneseq
    %v388 = vshrl.u32 %v387, 7
    %v389 = vsub.s32 0, %v388
    %v390 = vrot.slane %v385, %v389
    %v400 = vunpack.c.l.b16 %v377
    %v401 = vunpack.c.l.b16 %v378
    %v402 = vunpack.c.l.b16 %v379
    %v403 = vunpack.c.l.b16 %v380
    %v404 = vunpack.c.l.b16 %v381
    %v405 = vunpack.c.l.b16 %v382
    %v406 = vunpack.c.l.b16 %v383
    %v407 = vunpack.c.l.b16 %v384
    %v408 = vpack.c.b16 %v401, %v400
    %v409 = vpack.c.b16 %v403, %v402
    %v410 = vpack.c.b16 %v405, %v404
    %v411 = vpack.c.b16 %v407, %v406
    %v417 = vsel %vm207, %v375, 0
    %v420 = vsel %vm207, %v376, 0
    %422 = vmatprep.subr.bf16.mxu0 0
    %423 = vmatpush1.bf16.msra.mxu0 0
    %424 = vmatprep.subr.bf16.mxu0 0
    %425 = vmatpush1.bf16.msra.mxu0 0
    %426 = vmatprep.subr.bf16.mxu0 0
    %427 = vmatpush1.bf16.msra.mxu0 0
    %428 = vmatprep.subr.bf16.mxu0 0
    %429 = vmatpush1.bf16.msra.mxu0 0
    %430 = vmatprep.subr.bf16.mxu0 0
    %431 = vmatpush1.bf16.msra.mxu0 %v411
    %432 = vmatprep.subr.bf16.mxu0 0
    %433 = vmatpush1.bf16.msra.mxu0 %v410
    %434 = vmatprep.subr.bf16.mxu0 0
    %435 = vmatpush1.bf16.msra.mxu0 %v409
    %436 = vmatprep.subr.bf16.mxu0 0
    %437 = vmatpush1.bf16.msra.mxu0 %v408
    %438 = vmatprep.subr.bf16.mxu0 0
    %439 = vmatpush2.bf16.msra.mxu0 0
    %440 = vmatprep.subr.bf16.mxu0 0
    %441 = vmatpush2.bf16.msra.mxu0 0
    %442 = vmatprep.subr.bf16.mxu0 0
    %443 = vmatpush2.bf16.msra.mxu0 0
    %444 = vmatprep.subr.bf16.mxu0 0
    %445 = vmatpush2.bf16.msra.mxu0 0
    %446 = vmatprep.subr.bf16.mxu0 0
    %447 = vmatpush2.bf16.msra.mxu0 0
    %448 = vmatprep.subr.bf16.mxu0 0
    %449 = vmatpush2.bf16.msra.mxu0 0
    %450 = vmatprep.subr.bf16.mxu0 0
    %451 = vmatpush2.bf16.msra.mxu0 0
    %452 = vmatprep.subr.bf16.mxu0 0
    %453 = vmatpush2.bf16.msra.mxu0 0
    %454 = vmatprep.mubr.bf16.mxu0 0
    %455 = vmatmul.mubr.bf16.gmra.mxu0 %v417
    %v456 = vpop.f32.mrf.mxu0
    %v457 = vadd.f32 %v390, %v456
    %v458 = vpop.f32.mrf.mxu0
    %v459 = vpop.f32.mrf.mxu0
    %v460 = vadd.f32 %v390, %v459
    %v461 = vpop.f32.mrf.mxu0
    %462 = vmatprep.mubr.bf16.mxu0 0
    %463 = vmatmul.mubr.bf16.gmra.mxu0 %v420
    %v464 = vpop.f32.mrf.mxu0
    %v465 = vadd.f32 %v390, %v464
    %v466 = vpop.f32.mrf.mxu0
    %v467 = vpop.f32.mrf.mxu0
    %v468 = vpop.f32.mrf.mxu0
    %469 = vdwg.mxu0
    %v470 = vsub.f32 0.0, %v457
    %v471 = vsub.f32 0.0, %v460
    %v472 = vsub.f32 0.0, %v465
    %v473 = vmul.f32 %v470, 1.442695
    %v474 = vpow.pop %v473
    %v475 = vmul.f32 %v471, 1.442695
    %v476 = vpow.pop %v475
    %v477 = vmul.f32 %v472, 1.442695
    %v478 = vpow.pop %v477
    %v479 = vadd.f32 %v474, 1.0
    %v480 = vadd.f32 %v476, 1.0
    %v481 = vadd.f32 %v478, 1.0
    %v482 = vrcp.pop %v479
    %v483 = vrcp.pop %v480
    %v484 = vrcp.pop %v481
    %vm485 = vcmask 130048
    %486 = vst.msk [vmem:[%s9] sm:$0xff] %vm485, %v482
    %487 = vst.msk [vmem:[%s9 + $0x8] sm:$0xff] %vm485, %v483
    %488 = vst.msk [vmem:[%s9 + $0x10] sm:$0xff] %vm485, %v484
    // Predicated region
    $region50: #{tpu_custom_call.1} parent=1 // pred_check
      _
    $region51: #{tpu_custom_call.1} parent=1 // pred_check_branch
      %490 = sbr.rel (0) target = $region53
    $region52: #{tpu_custom_call.1} parent=1 // pred_region
      _
    $region53: #{tpu_custom_call.1} parent=1 // pred_fallthru
      _
    // Predicated region
    $region54: #{tpu_custom_call.1} parent=1 // pred_check
      _
    $region55: #{tpu_custom_call.1} parent=1 // pred_check_branch
      %492 = sbr.rel (0) target = $region57
    $region56: #{tpu_custom_call.1} parent=1 // pred_region
      _
    $region57: #{tpu_custom_call.1} parent=1 // pred_fallthru
      _
    %493 = vsyncpa [#allocation3], 1
    %494 = vsyncpa [#allocation5], 1

</llo_original>
